<compile_context>
chip_gen: v7x
topology: tpu7x:2x2x1
jax: 0.10.0
libtpu: 0.0.40
codegen_flags: <defaults>
</compile_context>

<pallas_src>
import functools

import jax
import jax.numpy as jnp
from jax.experimental import pallas as pl
from jax.experimental.pallas import tpu as pltpu


def _updater_kernel(x_ref, w1_ref, b1_ref, w2_ref, b2_ref, w3_ref, o_ref, *,
                    layer1_on_vpu: bool):
    # x_ref: (C_in, TILE_PIX)  -- channels on sublanes, pixels on lanes.
    # w1: (64, C_in), w2: (64, 64), w3: (C_out, 64); b1/b2: (64, 1) f32.
    x = x_ref[...]

    if layer1_on_vpu:
        # Tiny contraction (C_in <= 4): outer-product accumulate on the VPU,
        # keeping the MXU free for layers 2-3.  All in f32.
        xf = x.astype(jnp.float32)
        w1 = w1_ref[...].astype(jnp.float32)
        h = jnp.broadcast_to(b1_ref[...], (w1.shape[0], xf.shape[1]))
        for c in range(xf.shape[0]):                       # static, small
            h = h + w1[:, c:c + 1] * xf[c:c + 1, :]
    else:
        # bf16 MXU operands, f32 accumulation.
        h = jnp.dot(w1_ref[...], x.astype(jnp.bfloat16),
                    preferred_element_type=jnp.float32) + b1_ref[...]
    h = jnp.maximum(h, 0.0)                                 # (64, T) f32

    h = jnp.dot(w2_ref[...], h.astype(jnp.bfloat16),
                preferred_element_type=jnp.float32) + b2_ref[...]
    h = jnp.maximum(h, 0.0)                                 # (64, T) f32

    o = jnp.dot(w3_ref[...], h.astype(jnp.bfloat16),
                preferred_element_type=jnp.float32)         # (C_out, T) f32
    o_ref[...] = o.astype(o_ref.dtype)


def updater_forward(x_nchw, params, *, tile_pix=8192, layer1_on_vpu=None):
    """x_nchw: (N, C_in, H, W). Returns (N, C_out, H, W) in x's dtype.

    Matmuls use bf16 operands with f32 accumulation (see header note).
    layer1_on_vpu: None -> auto (True when C_in <= 4).
    """
    w1, b1, w2, b2, w3 = params
    N, C_in, H, W = x_nchw.shape
    C_hid = w1.shape[0]
    C_out = w3.shape[0]
    HW = H * W
    out_dtype = x_nchw.dtype

    if layer1_on_vpu is None:
        layer1_on_vpu = C_in <= 4

    # No activation dtype round trip: reshape only (free, contiguous).
    x3d = x_nchw.reshape(N, C_in, HW)
    # Weights are tiny; cast once in the wrapper (bf16 for MXU layers).
    w1s = w1.astype(jnp.float32 if layer1_on_vpu else jnp.bfloat16)
    w2s = w2.astype(jnp.bfloat16)
    w3s = w3.astype(jnp.bfloat16)
    b1f = b1.astype(jnp.float32)
    b2f = b2.astype(jnp.float32)

    # Pixel (lane) tile: full extent if it fits, else a multiple of 128.
    tp = min(tile_pix, HW)
    if tp < HW:
        tp = max(128, (tp // 128) * 128)
    # v7x: keep >=2 grid programs so both TensorCores get work.
    if N * pl.cdiv(HW, tp) < 2 and HW >= 256:
        tp = max(128, ((HW // 2) // 128) * 128)
    grid = (N, pl.cdiv(HW, tp))

    x_item = jnp.dtype(x_nchw.dtype).itemsize
    o_item = jnp.dtype(out_dtype).itemsize
    M = N * HW
    cost = pl.CostEstimate(
        flops=2 * M * (C_in * C_hid + C_hid * C_hid + C_hid * C_out),
        transcendentals=0,
        bytes_accessed=M * C_in * x_item + M * C_out * o_item
        + w1s.size * jnp.dtype(w1s.dtype).itemsize
        + (w2s.size + w3s.size) * 2 + (b1f.size + b2f.size) * 4,
    )

    # VMEM sized to actual need (double-buffered I/O + f32/bf16 intermediates),
    # clamped well below v7x's 64 MiB physical VMEM.
    vmem_need = (2 * C_in * tp * x_item + 2 * C_out * tp * o_item
                 + 8 * C_hid * tp * 4)
    vmem_limit = int(min(max(vmem_need * 1.25, 8 << 20), 32 << 20))

    out3d = pl.pallas_call(
        functools.partial(_updater_kernel, layer1_on_vpu=layer1_on_vpu),
        out_shape=jax.ShapeDtypeStruct((N, C_out, HW), out_dtype),
        grid_spec=pltpu.PrefetchScalarGridSpec(
            num_scalar_prefetch=0,
            grid=grid,
            in_specs=[
                # x tile: squeeze batch dim, channels on sublanes, pixels on lanes.
                pl.BlockSpec((None, C_in, tp), lambda n, p: (n, 0, p)),
                # Grid-invariant weights/biases (constant index_map -> hoisted).
                pl.BlockSpec(w1s.shape, lambda n, p: (0, 0)),
                pl.BlockSpec(b1f.shape, lambda n, p: (0, 0)),
                pl.BlockSpec(w2s.shape, lambda n, p: (0, 0)),
                pl.BlockSpec(b2f.shape, lambda n, p: (0, 0)),
                pl.BlockSpec(w3s.shape, lambda n, p: (0, 0)),
            ],
            out_specs=pl.BlockSpec((None, C_out, tp), lambda n, p: (n, 0, p)),
        ),
        compiler_params=pltpu.CompilerParams(
            dimension_semantics=("parallel", "parallel"),
            vmem_limit_bytes=vmem_limit,
        ),
        cost_estimate=cost,
    )(x3d, w1s, b1f, w2s, b2f, w3s)

    return out3d.reshape(N, C_out, H, W)


def init_updater_params(key, in_channels, out_channels, zero_bias=True):
    """Deterministic synthetic init. Weights stored as (C_out, C_in) (same
    orientation as Conv2d's (C_out, C_in, 1, 1) weight); biases as (64, 1)."""
    k1, k2, k3 = jax.random.split(key, 3)

    def kaiming_uniform(k, fan_in, shape):
        bound = (1.0 / fan_in) ** 0.5
        return jax.random.uniform(k, shape, jnp.float32, -bound, bound)

    w1 = kaiming_uniform(k1, in_channels, (64, in_channels))
    w2 = kaiming_uniform(k2, 64, (64, 64))
    w3 = kaiming_uniform(k3, 64, (out_channels, 64))
    # zero_bias=True -> biases initialized to zero (matches the module init).
    b1 = jnp.zeros((64, 1), jnp.float32)
    b2 = jnp.zeros((64, 1), jnp.float32)
    return (w1, b1, w2, b2, w3)


def _reference(x, params):
    w1, b1, w2, b2, w3 = params
    N, C_in, H, W = x.shape
    C_out = w3.shape[0]
    x2 = x.reshape(N, C_in, H * W)
    h = jnp.maximum(jnp.einsum("oc,ncp->nop", w1, x2) + b1[None], 0.0)
    h = jnp.maximum(jnp.einsum("oc,ncp->nop", w2, h) + b2[None], 0.0)
    o = jnp.einsum("oc,ncp->nop", w3, h)
    return o.reshape(N, C_out, H, W)


if __name__ == "__main__":
    key = jax.random.PRNGKey(0)
    kx, kp = jax.random.split(key)

    N, C_in, H, W = 2, 4, 16, 16
    C_out = 8

    x = jax.random.normal(kx, (N, C_in, H, W), jnp.float32)
    params = init_updater_params(kp, C_in, C_out, zero_bias=True)
    ref = _reference(x, params)

    # Default path: layer 1 on VPU (f32), layers 2-3 on MXU with bf16
    # operands + f32 accumulation -> looser tolerance vs pure-f32 reference.
    out = jax.block_until_ready(updater_forward(x, params))
    assert out.shape == (N, C_out, H, W), out.shape
    assert out.dtype == x.dtype
    assert jnp.allclose(out, ref, atol=5e-2, rtol=5e-2)

    # All-MXU path (layer1_on_vpu=False), bf16 operands everywhere.
    out_mxu = jax.block_until_ready(
        updater_forward(x, params, layer1_on_vpu=False))
    assert out_mxu.shape == (N, C_out, H, W)
    assert jnp.allclose(out_mxu, ref, atol=5e-2, rtol=5e-2)

    print("KERNEL_OK")
</pallas_src>

<mosaic_0001>
module attributes {stable_mosaic.version = 11 : i64} {
  func.func @_updater_kernel(%arg0: i32, %arg1: i32, %arg2: memref<1x4x256xf32, #tpu.memory_space<vmem>>, %arg3: memref<64x4xf32, #tpu.memory_space<vmem>>, %arg4: memref<64x1xf32, #tpu.memory_space<vmem>>, %arg5: memref<64x64xbf16, #tpu.memory_space<vmem>>, %arg6: memref<64x1xf32, #tpu.memory_space<vmem>>, %arg7: memref<8x64xbf16, #tpu.memory_space<vmem>>, %arg8: memref<1x8x256xf32, #tpu.memory_space<vmem>>) attributes {dimension_semantics = [#tpu.dimension_semantics<parallel>, #tpu.dimension_semantics<parallel>], iteration_bounds = array<i64: 2, 1>, scalar_prefetch = 0 : i64, scratch_operands = 0 : i64, tpu.core_type = #tpu.core_type<tc>, window_params = [{transform_indices = @transform_0, window_bounds = array<i64: 1, 4, 256>}, {pipeline_mode = #tpu.pipeline_mode<synchronous>, transform_indices = @transform_1, window_bounds = array<i64: 64, 4>}, {pipeline_mode = #tpu.pipeline_mode<synchronous>, transform_indices = @transform_2, window_bounds = array<i64: 64, 1>}, {pipeline_mode = #tpu.pipeline_mode<synchronous>, transform_indices = @transform_3, window_bounds = array<i64: 64, 64>}, {pipeline_mode = #tpu.pipeline_mode<synchronous>, transform_indices = @transform_4, window_bounds = array<i64: 64, 1>}, {pipeline_mode = #tpu.pipeline_mode<synchronous>, transform_indices = @transform_5, window_bounds = array<i64: 8, 64>}, {transform_indices = @transform_6, window_bounds = array<i64: 1, 8, 256>}]} {
    %c0 = arith.constant 0 : index
    %c0_0 = arith.constant 0 : index
    %c0_1 = arith.constant 0 : index
    %0 = vector.load %arg2[%c0, %c0_0, %c0_1] : memref<1x4x256xf32, #tpu.memory_space<vmem>>, vector<1x4x256xf32>
    %1 = vector.shape_cast %0 : vector<1x4x256xf32> to vector<4x256xf32>
    %c0_2 = arith.constant 0 : index
    %c0_3 = arith.constant 0 : index
    %2 = vector.load %arg3[%c0_2, %c0_3] : memref<64x4xf32, #tpu.memory_space<vmem>>, vector<64x4xf32>
    %c0_4 = arith.constant 0 : index
    %c0_5 = arith.constant 0 : index
    %3 = vector.load %arg4[%c0_4, %c0_5] : memref<64x1xf32, #tpu.memory_space<vmem>>, vector<64x1xf32>
    %4 = vector.shape_cast %3 : vector<64x1xf32> to vector<64x1xf32>
    %5 = vector.broadcast %4 : vector<64x1xf32> to vector<64x256xf32>
    %6 = vector.extract_strided_slice %2 {offsets = [0, 0], sizes = [64, 1], strides = [1, 1]} : vector<64x4xf32> to vector<64x1xf32>
    %7 = vector.extract_strided_slice %1 {offsets = [0, 0], sizes = [1, 256], strides = [1, 1]} : vector<4x256xf32> to vector<1x256xf32>
    %8 = vector.broadcast %6 : vector<64x1xf32> to vector<64x256xf32>
    %9 = vector.broadcast %7 : vector<1x256xf32> to vector<64x256xf32>
    %10 = arith.mulf %8, %9 : vector<64x256xf32>
    %11 = arith.addf %5, %10 : vector<64x256xf32>
    %12 = vector.extract_strided_slice %2 {offsets = [0, 1], sizes = [64, 1], strides = [1, 1]} : vector<64x4xf32> to vector<64x1xf32>
    %13 = vector.extract_strided_slice %1 {offsets = [1, 0], sizes = [1, 256], strides = [1, 1]} : vector<4x256xf32> to vector<1x256xf32>
    %14 = vector.broadcast %12 : vector<64x1xf32> to vector<64x256xf32>
    %15 = vector.broadcast %13 : vector<1x256xf32> to vector<64x256xf32>
    %16 = arith.mulf %14, %15 : vector<64x256xf32>
    %17 = arith.addf %11, %16 : vector<64x256xf32>
    %18 = vector.extract_strided_slice %2 {offsets = [0, 2], sizes = [64, 1], strides = [1, 1]} : vector<64x4xf32> to vector<64x1xf32>
    %19 = vector.extract_strided_slice %1 {offsets = [2, 0], sizes = [1, 256], strides = [1, 1]} : vector<4x256xf32> to vector<1x256xf32>
    %20 = vector.broadcast %18 : vector<64x1xf32> to vector<64x256xf32>
    %21 = vector.broadcast %19 : vector<1x256xf32> to vector<64x256xf32>
    %22 = arith.mulf %20, %21 : vector<64x256xf32>
    %23 = arith.addf %17, %22 : vector<64x256xf32>
    %24 = vector.extract_strided_slice %2 {offsets = [0, 3], sizes = [64, 1], strides = [1, 1]} : vector<64x4xf32> to vector<64x1xf32>
    %25 = vector.extract_strided_slice %1 {offsets = [3, 0], sizes = [1, 256], strides = [1, 1]} : vector<4x256xf32> to vector<1x256xf32>
    %26 = vector.broadcast %24 : vector<64x1xf32> to vector<64x256xf32>
    %27 = vector.broadcast %25 : vector<1x256xf32> to vector<64x256xf32>
    %28 = arith.mulf %26, %27 : vector<64x256xf32>
    %29 = arith.addf %23, %28 : vector<64x256xf32>
    %cst = arith.constant 0.000000e+00 : f32
    %30 = vector.broadcast %cst : f32 to vector<64x256xf32>
    %31 = arith.maximumf %29, %30 : vector<64x256xf32>
    %c0_6 = arith.constant 0 : index
    %c0_7 = arith.constant 0 : index
    %32 = vector.load %arg5[%c0_6, %c0_7] : memref<64x64xbf16, #tpu.memory_space<vmem>>, vector<64x64xbf16>
    %33 = arith.truncf %31 : vector<64x256xf32> to vector<64x256xbf16>
    %cst_8 = arith.constant dense<0.000000e+00> : vector<64x256xf32>
    %34 = tpu.matmul %32, %33, %cst_8 {dimension_numbers = #tpu.dot_dimension_numbers<[1], [0], [0], [1], [0, 0, 1, 1], [], []>} : vector<64x64xbf16>, vector<64x256xbf16>, vector<64x256xf32> -> vector<64x256xf32>
    %c0_9 = arith.constant 0 : index
    %c0_10 = arith.constant 0 : index
    %35 = vector.load %arg6[%c0_9, %c0_10] : memref<64x1xf32, #tpu.memory_space<vmem>>, vector<64x1xf32>
    %36 = vector.broadcast %35 : vector<64x1xf32> to vector<64x256xf32>
    %37 = arith.addf %34, %36 : vector<64x256xf32>
    %cst_11 = arith.constant 0.000000e+00 : f32
    %38 = vector.broadcast %cst_11 : f32 to vector<64x256xf32>
    %39 = arith.maximumf %37, %38 : vector<64x256xf32>
    %c0_12 = arith.constant 0 : index
    %c0_13 = arith.constant 0 : index
    %40 = vector.load %arg7[%c0_12, %c0_13] : memref<8x64xbf16, #tpu.memory_space<vmem>>, vector<8x64xbf16>
    %41 = arith.truncf %39 : vector<64x256xf32> to vector<64x256xbf16>
    %cst_14 = arith.constant dense<0.000000e+00> : vector<8x256xf32>
    %42 = tpu.matmul %40, %41, %cst_14 {dimension_numbers = #tpu.dot_dimension_numbers<[1], [0], [0], [1], [0, 0, 1, 1], [], []>} : vector<8x64xbf16>, vector<64x256xbf16>, vector<8x256xf32> -> vector<8x256xf32>
    %c0_15 = arith.constant 0 : index
    %c0_16 = arith.constant 0 : index
    %c0_17 = arith.constant 0 : index
    %43 = vector.load %arg8[%c0_15, %c0_16, %c0_17] : memref<1x8x256xf32, #tpu.memory_space<vmem>>, vector<1x8x256xf32>
    %44 = vector.shape_cast %43 : vector<1x8x256xf32> to vector<8x256xf32>
    %45 = vector.shape_cast %42 : vector<8x256xf32> to vector<1x8x256xf32>
    tpu.vector_store %arg8[%c0_15, %c0_16, %c0_17], %45 {strides = array<i32>} : memref<1x8x256xf32, #tpu.memory_space<vmem>>, vector<1x8x256xf32>,
    return
  }
  func.func @transform_0(%arg0: i32, %arg1: i32) -> (i32, i32, i32) {
    %c0_i32 = arith.constant 0 : i32
    %c0_i32_0 = arith.constant 0 : i32
    return %arg0, %c0_i32, %arg1 : i32, i32, i32
  }
  func.func @transform_1(%arg0: i32, %arg1: i32) -> (i32, i32) {
    %c0_i32 = arith.constant 0 : i32
    %c0_i32_0 = arith.constant 0 : i32
    %c0_i32_1 = arith.constant 0 : i32
    return %c0_i32, %c0_i32_0 : i32, i32
  }
  func.func @transform_2(%arg0: i32, %arg1: i32) -> (i32, i32) {
    %c0_i32 = arith.constant 0 : i32
    %c0_i32_0 = arith.constant 0 : i32
    %c0_i32_1 = arith.constant 0 : i32
    return %c0_i32, %c0_i32_0 : i32, i32
  }
  func.func @transform_3(%arg0: i32, %arg1: i32) -> (i32, i32) {
    %c0_i32 = arith.constant 0 : i32
    %c0_i32_0 = arith.constant 0 : i32
    %c0_i32_1 = arith.constant 0 : i32
    return %c0_i32, %c0_i32_0 : i32, i32
  }
  func.func @transform_4(%arg0: i32, %arg1: i32) -> (i32, i32) {
    %c0_i32 = arith.constant 0 : i32
    %c0_i32_0 = arith.constant 0 : i32
    %c0_i32_1 = arith.constant 0 : i32
    return %c0_i32, %c0_i32_0 : i32, i32
  }
  func.func @transform_5(%arg0: i32, %arg1: i32) -> (i32, i32) {
    %c0_i32 = arith.constant 0 : i32
    %c0_i32_0 = arith.constant 0 : i32
    %c0_i32_1 = arith.constant 0 : i32
    return %c0_i32, %c0_i32_0 : i32, i32
  }
  func.func @transform_6(%arg0: i32, %arg1: i32) -> (i32, i32, i32) {
    %c0_i32 = arith.constant 0 : i32
    %c0_i32_0 = arith.constant 0 : i32
    return %arg0, %c0_i32, %arg1 : i32, i32, i32
  }
}

</mosaic_0001>

<llo_original>
// kernel: tpu_custom_call.1
$region0: #{tpu_custom_call.1}
  #allocation0 [shape = 'u32[]', space=smem, size = 0x4, offset = 0x4, fixed_abs, tag = 'smem constant byte address 0x4 - core index']
  #allocation1 [shape = 'u32[144,128]{1,0:T(1,128)}', space=vmem, size = 0x12000, scoped, tag = 'internal scratch']
  %s0 = inlined_call_operand.vmem [shape: f32[2,4,256], index: 0, kind: input, shape index: {}]
  %s1 = inlined_call_operand.vmem [shape: f32[64,4], index: 1, kind: input, shape index: {}]
  %s2 = inlined_call_operand.vmem [shape: f32[64,1], index: 2, kind: input, shape index: {}]
  %s3 = inlined_call_operand.vmem [shape: bf16[64,64], index: 3, kind: input, shape index: {}]
  %s4 = inlined_call_operand.vmem [shape: f32[64,1], index: 4, kind: input, shape index: {}]
  %s5 = inlined_call_operand.vmem [shape: bf16[8,64], index: 5, kind: input, shape index: {}]
  %s6 = inlined_call_operand.hbm [shape: f32[2,8,256], index: 6, kind: output, shape index: {}]
  %s7 = sld [smem:[#allocation0]]
  $region57: #{tpu_custom_call.1} parent=0
    _
  %s9 = ssub.s32 1, %s7
  %s10 = scalar_select 0, %s9, %s7
  $region1: #{tpu_custom_call.1} parent=0
    #allocation2 [shape = 'u8[16384]{0}', space=vmem, size = 0x4000, scoped, tag = 'output window, operand 0']
    #allocation3 [shape = 's32[2]{0}', space=sflag, size = 0x8, scoped, tag = 'scoped memory for tpu_custom_call.1']
    %11 = vsyncpa [#allocation3], 0
    %s12 = scalar_lea.sflag [#allocation3], 1
    %13 = vsyncpa %s12, 0
    loop: start=0, step=1, limit=4
    $region2: #{tpu_custom_call.1} parent=1 // loop_pre_header
      _
    $region3: #{tpu_custom_call.1} parent=1 // loop_header
      %s15 = sphi 0, %s19
      %p16 = scmp.ge.s32.totalorder %s15, 4
      %s22 = sphi 0, %s34
      %s23 = sphi 0, %s30
      %s24 = sphi 0, %s22
      %s25 = sphi 0, %s23
      %s26 = sphi 0, %s24
      %s27 = sphi 0, %s25
      %s39 = sphi 0, %s41
      %s42 = sphi 0, %s39
      %s43 = sphi 0, %s42
      %s59 = sphi 0, %s43
      %s63 = sphi 0, %s63
      %s65 = sphi 0, %s63
      %s66 = sphi 0, %s65
      %s80 = sphi 0, %s66
      %s84 = sphi 0, %s84
      %s86 = sphi 0, %s84
      %s87 = sphi 0, %s86
      %s101 = sphi 0, %s87
      %s105 = sphi 0, %s105
      %s107 = sphi 0, %s105
      %s108 = sphi 0, %s107
      %s122 = sphi 0, %s108
      %s126 = sphi 0, %s126
      %s128 = sphi 0, %s126
      %s129 = sphi 0, %s128
      %s143 = sphi 0, %s129
      %s147 = sphi 0, %s147
      %s149 = sphi 0, %s147
      %s150 = sphi 0, %s149
      %s164 = sphi 0, %s150
      %s172 = sphi 0, %s174
      %s175 = sphi 0, %s172
      %s176 = sphi 0, %s175
      %s192 = sphi 0, %s176
    $region4: #{tpu_custom_call.1} parent=1 // loop_header_branch
      %18 = sbr.rel (%p16) target = $region8
    $region5: #{tpu_custom_call.1} parent=1 // loop_body
      %s20 = ssub.s32 %s15, 1
      %s21 = ssub.s32 %s15, 2
      %s28 = sadd.s32 1, %s23
      %p29 = scmp.ge.s32.totalorder %s28, 1
      %s30 = scalar_select %p29, 0, %s28
      %s31 = sadd.s32 1, %s22
      %s32 = scalar_select %p29, %s31, %s22
      %p33 = scmp.ge.s32.totalorder %s32, 2
      %s34 = scalar_select %p33, 0, %s32
      %s35 = ssub.s32 %s22, %s34
      %s36 = ssub.s32 %s23, %s30
      %s37 = sor.u32 %s35, %s36
      %p38 = scmp.eq.s32.totalorder %s37, 0
      %s40 = sadd.s32 %s39, 1
      %s41 = scalar_select %p38, %s39, %s40
      %p44 = pneg %p38
      %p45 = scmp.eq.s32.totalorder %s15, 1
      %p46 = por %p44, %p45
      %p47 = scmp.ne.s32.totalorder %s39, %s42
      %p48 = scmp.eq.s32.totalorder %s15, 0
      %p49 = por %p47, %p48
      %p50 = scmp.ne.s32.totalorder %s39, %s42
      %p51 = scmp.eq.s32.totalorder %s20, 1
      %p52 = por %p50, %p51
      %p53 = scmp.ne.s32.totalorder %s42, %s43
      %p54 = scmp.eq.s32.totalorder %s20, 0
      %p55 = por %p53, %p54
      %p56 = scmp.ne.s32.totalorder %s42, %s43
      %p57 = scmp.eq.s32.totalorder %s21, 1
      %p58 = por %p56, %p57
      %p60 = scmp.ne.s32.totalorder %s43, %s59
      %p61 = scmp.eq.s32.totalorder %s21, 0
      %p62 = por %p60, %p61
      %s64 = sadd.s32 %s63, 1
      %p67 = scmp.eq.s32.totalorder %s15, 1
      %p68 = scmp.ne.s32.totalorder %s63, %s65
      %p69 = scmp.eq.s32.totalorder %s15, 0
      %p70 = por %p68, %p69
      %p71 = scmp.ne.s32.totalorder %s63, %s65
      %p72 = scmp.eq.s32.totalorder %s20, 1
      %p73 = por %p71, %p72
      %p74 = scmp.ne.s32.totalorder %s65, %s66
      %p75 = scmp.eq.s32.totalorder %s20, 0
      %p76 = por %p74, %p75
      %p77 = scmp.ne.s32.totalorder %s65, %s66
      %p78 = scmp.eq.s32.totalorder %s21, 1
      %p79 = por %p77, %p78
      %p81 = scmp.ne.s32.totalorder %s66, %s80
      %p82 = scmp.eq.s32.totalorder %s21, 0
      %p83 = por %p81, %p82
      %s85 = sadd.s32 %s84, 1
      %p88 = scmp.eq.s32.totalorder %s15, 1
      %p89 = scmp.ne.s32.totalorder %s84, %s86
      %p90 = scmp.eq.s32.totalorder %s15, 0
      %p91 = por %p89, %p90
      %p92 = scmp.ne.s32.totalorder %s84, %s86
      %p93 = scmp.eq.s32.totalorder %s20, 1
      %p94 = por %p92, %p93
      %p95 = scmp.ne.s32.totalorder %s86, %s87
      %p96 = scmp.eq.s32.totalorder %s20, 0
      %p97 = por %p95, %p96
      %p98 = scmp.ne.s32.totalorder %s86, %s87
      %p99 = scmp.eq.s32.totalorder %s21, 1
      %p100 = por %p98, %p99
      %p102 = scmp.ne.s32.totalorder %s87, %s101
      %p103 = scmp.eq.s32.totalorder %s21, 0
      %p104 = por %p102, %p103
      %s106 = sadd.s32 %s105, 1
      %p109 = scmp.eq.s32.totalorder %s15, 1
      %p110 = scmp.ne.s32.totalorder %s105, %s107
      %p111 = scmp.eq.s32.totalorder %s15, 0
      %p112 = por %p110, %p111
      %p113 = scmp.ne.s32.totalorder %s105, %s107
      %p114 = scmp.eq.s32.totalorder %s20, 1
      %p115 = por %p113, %p114
      %p116 = scmp.ne.s32.totalorder %s107, %s108
      %p117 = scmp.eq.s32.totalorder %s20, 0
      %p118 = por %p116, %p117
      %p119 = scmp.ne.s32.totalorder %s107, %s108
      %p120 = scmp.eq.s32.totalorder %s21, 1
      %p121 = por %p119, %p120
      %p123 = scmp.ne.s32.totalorder %s108, %s122
      %p124 = scmp.eq.s32.totalorder %s21, 0
      %p125 = por %p123, %p124
      %s127 = sadd.s32 %s126, 1
      %p130 = scmp.eq.s32.totalorder %s15, 1
      %p131 = scmp.ne.s32.totalorder %s126, %s128
      %p132 = scmp.eq.s32.totalorder %s15, 0
      %p133 = por %p131, %p132
      %p134 = scmp.ne.s32.totalorder %s126, %s128
      %p135 = scmp.eq.s32.totalorder %s20, 1
      %p136 = por %p134, %p135
      %p137 = scmp.ne.s32.totalorder %s128, %s129
      %p138 = scmp.eq.s32.totalorder %s20, 0
      %p139 = por %p137, %p138
      %p140 = scmp.ne.s32.totalorder %s128, %s129
      %p141 = scmp.eq.s32.totalorder %s21, 1
      %p142 = por %p140, %p141
      %p144 = scmp.ne.s32.totalorder %s129, %s143
      %p145 = scmp.eq.s32.totalorder %s21, 0
      %p146 = por %p144, %p145
      %s148 = sadd.s32 %s147, 1
      %p151 = scmp.eq.s32.totalorder %s15, 1
      %p152 = scmp.ne.s32.totalorder %s147, %s149
      %p153 = scmp.eq.s32.totalorder %s15, 0
      %p154 = por %p152, %p153
      %p155 = scmp.ne.s32.totalorder %s147, %s149
      %p156 = scmp.eq.s32.totalorder %s20, 1
      %p157 = por %p155, %p156
      %p158 = scmp.ne.s32.totalorder %s149, %s150
      %p159 = scmp.eq.s32.totalorder %s20, 0
      %p160 = por %p158, %p159
      %p161 = scmp.ne.s32.totalorder %s149, %s150
      %p162 = scmp.eq.s32.totalorder %s21, 1
      %p163 = por %p161, %p162
      %p165 = scmp.ne.s32.totalorder %s150, %s164
      %p166 = scmp.eq.s32.totalorder %s21, 0
      %p167 = por %p165, %p166
      %s168 = ssub.s32 %s22, %s34
      %s169 = ssub.s32 %s23, %s30
      %s170 = sor.u32 %s168, %s169
      %p171 = scmp.eq.s32.totalorder %s170, 0
      %s173 = sadd.s32 %s172, 1
      %s174 = scalar_select %p171, %s172, %s173
      %p177 = pneg %p171
      %p178 = scmp.eq.s32.totalorder %s15, 1
      %p179 = por %p177, %p178
      %p180 = scmp.ne.s32.totalorder %s172, %s175
      %p181 = scmp.eq.s32.totalorder %s15, 0
      %p182 = por %p180, %p181
      %p183 = scmp.ne.s32.totalorder %s172, %s175
      %p184 = scmp.eq.s32.totalorder %s20, 1
      %p185 = por %p183, %p184
      %p186 = scmp.ne.s32.totalorder %s175, %s176
      %p187 = scmp.eq.s32.totalorder %s20, 0
      %p188 = por %p186, %p187
      %p189 = scmp.ne.s32.totalorder %s175, %s176
      %p190 = scmp.eq.s32.totalorder %s21, 1
      %p191 = por %p189, %p190
      %p193 = scmp.ne.s32.totalorder %s176, %s192
      %p194 = scmp.eq.s32.totalorder %s21, 0
      %p195 = por %p193, %p194
      %p196 = scmp.le.s32.totalorder 1, %s15
      %p197 = scmp.lt.s32.totalorder %s15, 3
      %p198 = pnand %p196, %p197
      %p199 = pneg %p198
      // Predicated region
      $region9: #{tpu_custom_call.1} parent=5 // pred_check
        _
      $region10: #{tpu_custom_call.1} parent=5 // pred_check_branch
        %201 = sbr.rel (%p198) target = $region12
      $region11: #{tpu_custom_call.1} parent=5 // pred_region
        %s202 = ssub.s32 %s15, 1
        // Predicated region
        $region13: #{tpu_custom_call.1} parent=11 // pred_check
          %p203 = pneg %p76
        $region14: #{tpu_custom_call.1} parent=11 // pred_check_branch
          %205 = sbr.rel (%p203) target = $region16
        $region15: #{tpu_custom_call.1} parent=11 // pred_region
          _
        $region16: #{tpu_custom_call.1} parent=11 // pred_fallthru
          _
        // Predicated region
        $region17: #{tpu_custom_call.1} parent=11 // pred_check
          %p206 = pneg %p97
        $region18: #{tpu_custom_call.1} parent=11 // pred_check_branch
          %208 = sbr.rel (%p206) target = $region20
        $region19: #{tpu_custom_call.1} parent=11 // pred_region
          _
        $region20: #{tpu_custom_call.1} parent=11 // pred_fallthru
          _
        // Predicated region
        $region21: #{tpu_custom_call.1} parent=11 // pred_check
          %p209 = pneg %p118
        $region22: #{tpu_custom_call.1} parent=11 // pred_check_branch
          %211 = sbr.rel (%p209) target = $region24
        $region23: #{tpu_custom_call.1} parent=11 // pred_region
          _
        $region24: #{tpu_custom_call.1} parent=11 // pred_fallthru
          _
        // Predicated region
        $region25: #{tpu_custom_call.1} parent=11 // pred_check
          %p212 = pneg %p139
        $region26: #{tpu_custom_call.1} parent=11 // pred_check_branch
          %214 = sbr.rel (%p212) target = $region28
        $region27: #{tpu_custom_call.1} parent=11 // pred_region
          _
        $region28: #{tpu_custom_call.1} parent=11 // pred_fallthru
          _
        // Predicated region
        $region29: #{tpu_custom_call.1} parent=11 // pred_check
          %p215 = pneg %p160
        $region30: #{tpu_custom_call.1} parent=11 // pred_check_branch
          %217 = sbr.rel (%p215) target = $region32
        $region31: #{tpu_custom_call.1} parent=11 // pred_region
          _
        $region32: #{tpu_custom_call.1} parent=11 // pred_fallthru
          _
      $region12: #{tpu_custom_call.1} parent=5 // pred_fallthru
        _
      %p218 = scmp.lt.s32.totalorder %s15, 2
      // Predicated region
      $region33: #{tpu_custom_call.1} parent=5 // pred_check
        %p219 = pneg %p218
      $region34: #{tpu_custom_call.1} parent=5 // pred_check_branch
        %221 = sbr.rel (%p219) target = $region36
      $region35: #{tpu_custom_call.1} parent=5 // pred_region
        // Predicated region
        $region37: #{tpu_custom_call.1} parent=35 // pred_check
          %p222 = pneg %p49
        $region38: #{tpu_custom_call.1} parent=35 // pred_check_branch
          %224 = sbr.rel (%p222) target = $region40
        $region39: #{tpu_custom_call.1} parent=35 // pred_region
          %s225 = smul.u32 2, %s23
          %p226 = scmp.lt.s32.totalorder %s22, 1
          %s227 = scalar_select %p226, %s22, 1
          %p228 = scmp.lt.s32.totalorder %s225, 1
          %s229 = scalar_select %p228, %s225, 1
          %s230 = smul.addr %s227, 2
          %s231 = sadd.s32 %s229, %s230
          %s232 = smul.addr %s231, 4
          %s233 = scalar_lea.vmem %s0, %s232
          %s234 = smul.u32 2, %s23
        $region40: #{tpu_custom_call.1} parent=35 // pred_fallthru
          _
      $region36: #{tpu_custom_call.1} parent=5 // pred_fallthru
        _
      %p235 = scmp.le.s32.totalorder 1, %s15
      %p236 = scmp.lt.s32.totalorder %s15, 3
      %p237 = pnand %p235, %p236
      %p238 = pneg %p237
      // Predicated region
      $region41: #{tpu_custom_call.1} parent=5 // pred_check
        _
      $region42: #{tpu_custom_call.1} parent=5 // pred_check_branch
        %240 = sbr.rel (%p237) target = $region44
      $region43: #{tpu_custom_call.1} parent=5 // pred_region
        %s241 = ssub.s32 %s15, 1
        %s242 = smul.u32 2, %s25
        %p243 = scmp.lt.s32.totalorder %s24, 1
        %s244 = scalar_select %p243, %s24, 1
        %p245 = scmp.lt.s32.totalorder %s242, 1
        %s246 = scalar_select %p245, %s242, 1
        %s247 = smul.addr %s244, 2
        %s248 = sadd.s32 %s246, %s247
        %s249 = smul.addr %s248, 4
        %s250 = scalar_lea.vmem %s0, %s249
        %p251 = pneg %p55
        %p252 = pneg %p52
        %p253 = pneg %p76
        %p254 = pneg %p73
        %p255 = pneg %p97
        %p256 = pneg %p94
        %p257 = pneg %p118
        %p258 = pneg %p115
        %p259 = pneg %p139
        %p260 = pneg %p136
        %p261 = pneg %p160
        %p262 = pneg %p157
        %p263 = pneg %p188
        %p264 = pneg %p185
        %s265 = sand.u32 %s175, 1
        %s266 = scalar_lea.sflag [#allocation3], %s265
        %s267 = sand.u32 %s175, 1
        %s268 = smul.addr %s267, 16
        %s269 = scalar_lea.vmem [#allocation2], %s268
        %s270 = smul.u32 2, %s25
        %p271 = scmp.lt.s32.totalorder %s24, 1
        %s272 = scalar_select %p271, %s24, 1
        %p273 = scmp.lt.s32.totalorder %s270, 1
        %s274 = scalar_select %p273, %s270, 1
        %s275 = smul.addr %s272, 2
        %s276 = sadd.s32 %s274, %s275
        %s277 = smul.addr %s276, 4
        %s278 = scalar_lea.vmem %s0, %s277
        %s279 = smul.u32 2, %s25
        %s280 = smul.u32 2, %s25
        %v282 = vld [vmem:[%s278] sm:$0xff]
        %v283 = vld [vmem:[%s1] sm:$0xff]
        %v284 = vld [vmem:[%s1 + $0x8] sm:$0xff]
        %v285 = vld [vmem:[%s1 + $0x10] sm:$0xff]
        %v286 = vld [vmem:[%s1 + $0x18] sm:$0xff]
        %v287 = vld [vmem:[%s1 + $0x20] sm:$0xff]
        %v288 = vld [vmem:[%s1 + $0x28] sm:$0xff]
        %v289 = vld [vmem:[%s1 + $0x30] sm:$0xff]
        %v290 = vld [vmem:[%s1 + $0x38] sm:$0xff]
        %v291 = vld [vmem:[%s2] sm:$0xff]
        %v292 = vld [vmem:[%s2 + $0x8] sm:$0xff]
        %v293 = vld [vmem:[%s2 + $0x10] sm:$0xff]
        %v294 = vld [vmem:[%s2 + $0x18] sm:$0xff]
        %v295 = vld [vmem:[%s2 + $0x20] sm:$0xff]
        %v296 = vld [vmem:[%s2 + $0x28] sm:$0xff]
        %v297 = vld [vmem:[%s2 + $0x30] sm:$0xff]
        %v298 = vld [vmem:[%s2 + $0x38] sm:$0xff]
        %300 = vset.pattern.permute.xlu0 0
        %301 = vperm.xlu0 %300, %v291
        %v302 = vpop.permute.xlu0 %301
        %305 = vset.pattern.permute.xlu0 0
        %306 = vperm.xlu0 %305, %v292
        %v307 = vpop.permute.xlu0 %306
        %310 = vset.pattern.permute.xlu0 0
        %311 = vperm.xlu0 %310, %v293
        %v312 = vpop.permute.xlu0 %311
        %315 = vset.pattern.permute.xlu0 0
        %316 = vperm.xlu0 %315, %v294
        %v317 = vpop.permute.xlu0 %316
        %320 = vset.pattern.permute.xlu0 0
        %321 = vperm.xlu0 %320, %v295
        %v322 = vpop.permute.xlu0 %321
        %325 = vset.pattern.permute.xlu0 0
        %326 = vperm.xlu0 %325, %v296
        %v327 = vpop.permute.xlu0 %326
        %330 = vset.pattern.permute.xlu0 0
        %331 = vperm.xlu0 %330, %v297
        %v332 = vpop.permute.xlu0 %331
        %335 = vset.pattern.permute.xlu0 0
        %336 = vperm.xlu0 %335, %v298
        %v337 = vpop.permute.xlu0 %336
        %340 = vset.pattern.permute.xlu0 0
        %341 = vperm.xlu0 %340, %v283
        %v342 = vpop.permute.xlu0 %341
        %345 = vset.pattern.permute.xlu0 0
        %346 = vperm.xlu0 %345, %v284
        %v347 = vpop.permute.xlu0 %346
        %350 = vset.pattern.permute.xlu0 0
        %351 = vperm.xlu0 %350, %v285
        %v352 = vpop.permute.xlu0 %351
        %355 = vset.pattern.permute.xlu0 0
        %356 = vperm.xlu0 %355, %v286
        %v357 = vpop.permute.xlu0 %356
        %360 = vset.pattern.permute.xlu0 0
        %361 = vperm.xlu0 %360, %v287
        %v362 = vpop.permute.xlu0 %361
        %365 = vset.pattern.permute.xlu0 0
        %366 = vperm.xlu0 %365, %v288
        %v367 = vpop.permute.xlu0 %366
        %370 = vset.pattern.permute.xlu0 0
        %371 = vperm.xlu0 %370, %v289
        %v372 = vpop.permute.xlu0 %371
        %375 = vset.pattern.permute.xlu0 0
        %376 = vperm.xlu0 %375, %v290
        %v377 = vpop.permute.xlu0 %376
        %v380 = vlaneseq
        %v381 = vshrl.u32 %v380, 7
        %v382 = vsub.s32 0, %v381
        %v383 = vrot.slane %v282, %v382
        %v384 = vlaneseq
        %v385 = vshrl.u32 %v384, 7
        %v386 = vsub.s32 4, %v385
        %v387 = vrot.slane %v282, %v386
        %v390 = vlaneseq
        %v391 = vshrl.u32 %v390, 7
        %v392 = vsub.s32 0, %v391
        %v393 = vrot.slane %v383, %v392
        %v394 = vlaneseq
        %v395 = vshrl.u32 %v394, 7
        %v396 = vsub.s32 0, %v395
        %v397 = vrot.slane %v387, %v396
        %v398 = vmul.f32 %v342, %v393
        %v399 = vmul.f32 %v342, %v397
        %v400 = vmul.f32 %v347, %v393
        %v401 = vmul.f32 %v347, %v397
        %v402 = vmul.f32 %v352, %v393
        %v403 = vmul.f32 %v352, %v397
        %v404 = vmul.f32 %v357, %v393
        %v405 = vmul.f32 %v357, %v397
        %v406 = vmul.f32 %v362, %v393
        %v407 = vmul.f32 %v362, %v397
        %v408 = vmul.f32 %v367, %v393
        %v409 = vmul.f32 %v367, %v397
        %v410 = vmul.f32 %v372, %v393
        %v411 = vmul.f32 %v372, %v397
        %v412 = vmul.f32 %v377, %v393
        %v413 = vmul.f32 %v377, %v397
        %v414 = vadd.f32 %v302, %v398
        %v415 = vadd.f32 %v302, %v399
        %v416 = vadd.f32 %v307, %v400
        %v417 = vadd.f32 %v307, %v401
        %v418 = vadd.f32 %v312, %v402
        %v419 = vadd.f32 %v312, %v403
        %v420 = vadd.f32 %v317, %v404
        %v421 = vadd.f32 %v317, %v405
        %v422 = vadd.f32 %v322, %v406
        %v423 = vadd.f32 %v322, %v407
        %v424 = vadd.f32 %v327, %v408
        %v425 = vadd.f32 %v327, %v409
        %v426 = vadd.f32 %v332, %v410
        %v427 = vadd.f32 %v332, %v411
        %v428 = vadd.f32 %v337, %v412
        %v429 = vadd.f32 %v337, %v413
        %430 = vset.pattern.permute.xlu0 1
        %431 = vperm.xlu0 %430, %v283
        %v432 = vpop.permute.xlu0 %431
        %434 = vset.pattern.permute.xlu0 1
        %435 = vperm.xlu0 %434, %v284
        %v436 = vpop.permute.xlu0 %435
        %438 = vset.pattern.permute.xlu0 1
        %439 = vperm.xlu0 %438, %v285
        %v440 = vpop.permute.xlu0 %439
        %442 = vset.pattern.permute.xlu0 1
        %443 = vperm.xlu0 %442, %v286
        %v444 = vpop.permute.xlu0 %443
        %446 = vset.pattern.permute.xlu0 1
        %447 = vperm.xlu0 %446, %v287
        %v448 = vpop.permute.xlu0 %447
        %450 = vset.pattern.permute.xlu0 1
        %451 = vperm.xlu0 %450, %v288
        %v452 = vpop.permute.xlu0 %451
        %454 = vset.pattern.permute.xlu0 1
        %455 = vperm.xlu0 %454, %v289
        %v456 = vpop.permute.xlu0 %455
        %458 = vset.pattern.permute.xlu0 1
        %459 = vperm.xlu0 %458, %v290
        %v460 = vpop.permute.xlu0 %459
        %v462 = vlaneseq
        %v463 = vshrl.u32 %v462, 7
        %v464 = vsub.s32 1, %v463
        %v465 = vrot.slane %v282, %v464
        %v466 = vlaneseq
        %v467 = vshrl.u32 %v466, 7
        %v468 = vsub.s32 5, %v467
        %v469 = vrot.slane %v282, %v468
        %v472 = vlaneseq
        %v473 = vshrl.u32 %v472, 7
        %v474 = vsub.s32 1, %v473
        %v475 = vrot.slane %v465, %v474
        %v476 = vlaneseq
        %v477 = vshrl.u32 %v476, 7
        %v478 = vsub.s32 1, %v477
        %v479 = vrot.slane %v469, %v478
        %v480 = vmul.f32 %v432, %v475
        %v481 = vmul.f32 %v432, %v479
        %v482 = vmul.f32 %v436, %v475
        %v483 = vmul.f32 %v436, %v479
        %v484 = vmul.f32 %v440, %v475
        %v485 = vmul.f32 %v440, %v479
        %v486 = vmul.f32 %v444, %v475
        %v487 = vmul.f32 %v444, %v479
        %v488 = vmul.f32 %v448, %v475
        %v489 = vmul.f32 %v448, %v479
        %v490 = vmul.f32 %v452, %v475
        %v491 = vmul.f32 %v452, %v479
        %v492 = vmul.f32 %v456, %v475
        %v493 = vmul.f32 %v456, %v479
        %v494 = vmul.f32 %v460, %v475
        %v495 = vmul.f32 %v460, %v479
        %v496 = vadd.f32 %v414, %v480
        %v497 = vadd.f32 %v415, %v481
        %v498 = vadd.f32 %v416, %v482
        %v499 = vadd.f32 %v417, %v483
        %v500 = vadd.f32 %v418, %v484
        %v501 = vadd.f32 %v419, %v485
        %v502 = vadd.f32 %v420, %v486
        %v503 = vadd.f32 %v421, %v487
        %v504 = vadd.f32 %v422, %v488
        %v505 = vadd.f32 %v423, %v489
        %v506 = vadd.f32 %v424, %v490
        %v507 = vadd.f32 %v425, %v491
        %v508 = vadd.f32 %v426, %v492
        %v509 = vadd.f32 %v427, %v493
        %v510 = vadd.f32 %v428, %v494
        %v511 = vadd.f32 %v429, %v495
        %512 = vset.pattern.permute.xlu0 2
        %513 = vperm.xlu0 %512, %v283
        %v514 = vpop.permute.xlu0 %513
        %516 = vset.pattern.permute.xlu0 2
        %517 = vperm.xlu0 %516, %v284
        %v518 = vpop.permute.xlu0 %517
        %520 = vset.pattern.permute.xlu0 2
        %521 = vperm.xlu0 %520, %v285
        %v522 = vpop.permute.xlu0 %521
        %524 = vset.pattern.permute.xlu0 2
        %525 = vperm.xlu0 %524, %v286
        %v526 = vpop.permute.xlu0 %525
        %528 = vset.pattern.permute.xlu0 2
        %529 = vperm.xlu0 %528, %v287
        %v530 = vpop.permute.xlu0 %529
        %532 = vset.pattern.permute.xlu0 2
        %533 = vperm.xlu0 %532, %v288
        %v534 = vpop.permute.xlu0 %533
        %536 = vset.pattern.permute.xlu0 2
        %537 = vperm.xlu0 %536, %v289
        %v538 = vpop.permute.xlu0 %537
        %540 = vset.pattern.permute.xlu0 2
        %541 = vperm.xlu0 %540, %v290
        %v542 = vpop.permute.xlu0 %541
        %v544 = vlaneseq
        %v545 = vshrl.u32 %v544, 7
        %v546 = vsub.s32 2, %v545
        %v547 = vrot.slane %v282, %v546
        %v548 = vlaneseq
        %v549 = vshrl.u32 %v548, 7
        %v550 = vsub.s32 6, %v549
        %v551 = vrot.slane %v282, %v550
        %v554 = vlaneseq
        %v555 = vshrl.u32 %v554, 7
        %v556 = vsub.s32 2, %v555
        %v557 = vrot.slane %v547, %v556
        %v558 = vlaneseq
        %v559 = vshrl.u32 %v558, 7
        %v560 = vsub.s32 2, %v559
        %v561 = vrot.slane %v551, %v560
        %v562 = vmul.f32 %v514, %v557
        %v563 = vmul.f32 %v514, %v561
        %v564 = vmul.f32 %v518, %v557
        %v565 = vmul.f32 %v518, %v561
        %v566 = vmul.f32 %v522, %v557
        %v567 = vmul.f32 %v522, %v561
        %v568 = vmul.f32 %v526, %v557
        %v569 = vmul.f32 %v526, %v561
        %v570 = vmul.f32 %v530, %v557
        %v571 = vmul.f32 %v530, %v561
        %v572 = vmul.f32 %v534, %v557
        %v573 = vmul.f32 %v534, %v561
        %v574 = vmul.f32 %v538, %v557
        %v575 = vmul.f32 %v538, %v561
        %v576 = vmul.f32 %v542, %v557
        %v577 = vmul.f32 %v542, %v561
        %v578 = vadd.f32 %v496, %v562
        %v579 = vadd.f32 %v497, %v563
        %v580 = vadd.f32 %v498, %v564
        %v581 = vadd.f32 %v499, %v565
        %v582 = vadd.f32 %v500, %v566
        %v583 = vadd.f32 %v501, %v567
        %v584 = vadd.f32 %v502, %v568
        %v585 = vadd.f32 %v503, %v569
        %v586 = vadd.f32 %v504, %v570
        %v587 = vadd.f32 %v505, %v571
        %v588 = vadd.f32 %v506, %v572
        %v589 = vadd.f32 %v507, %v573
        %v590 = vadd.f32 %v508, %v574
        %v591 = vadd.f32 %v509, %v575
        %v592 = vadd.f32 %v510, %v576
        %v593 = vadd.f32 %v511, %v577
        %594 = vset.pattern.permute.xlu0 3
        %595 = vperm.xlu0 %594, %v283
        %v596 = vpop.permute.xlu0 %595
        %598 = vset.pattern.permute.xlu0 3
        %599 = vperm.xlu0 %598, %v284
        %v600 = vpop.permute.xlu0 %599
        %602 = vset.pattern.permute.xlu0 3
        %603 = vperm.xlu0 %602, %v285
        %v604 = vpop.permute.xlu0 %603
        %606 = vset.pattern.permute.xlu0 3
        %607 = vperm.xlu0 %606, %v286
        %v608 = vpop.permute.xlu0 %607
        %610 = vset.pattern.permute.xlu0 3
        %611 = vperm.xlu0 %610, %v287
        %v612 = vpop.permute.xlu0 %611
        %614 = vset.pattern.permute.xlu0 3
        %615 = vperm.xlu0 %614, %v288
        %v616 = vpop.permute.xlu0 %615
        %618 = vset.pattern.permute.xlu0 3
        %619 = vperm.xlu0 %618, %v289
        %v620 = vpop.permute.xlu0 %619
        %622 = vset.pattern.permute.xlu0 3
        %623 = vperm.xlu0 %622, %v290
        %v624 = vpop.permute.xlu0 %623
        %v626 = vlaneseq
        %v627 = vshrl.u32 %v626, 7
        %v628 = vsub.s32 3, %v627
        %v629 = vrot.slane %v282, %v628
        %v630 = vlaneseq
        %v631 = vshrl.u32 %v630, 7
        %v632 = vsub.s32 7, %v631
        %v633 = vrot.slane %v282, %v632
        %v636 = vlaneseq
        %v637 = vshrl.u32 %v636, 7
        %v638 = vsub.s32 3, %v637
        %v639 = vrot.slane %v629, %v638
        %v640 = vlaneseq
        %v641 = vshrl.u32 %v640, 7
        %v642 = vsub.s32 3, %v641
        %v643 = vrot.slane %v633, %v642
        %v644 = vmul.f32 %v596, %v639
        %v645 = vmul.f32 %v596, %v643
        %v646 = vmul.f32 %v600, %v639
        %v647 = vmul.f32 %v600, %v643
        %v648 = vmul.f32 %v604, %v639
        %v649 = vmul.f32 %v604, %v643
        %v650 = vmul.f32 %v608, %v639
        %v651 = vmul.f32 %v608, %v643
        %v652 = vmul.f32 %v612, %v639
        %v653 = vmul.f32 %v612, %v643
        %v654 = vmul.f32 %v616, %v639
        %v655 = vmul.f32 %v616, %v643
        %v656 = vmul.f32 %v620, %v639
        %v657 = vmul.f32 %v620, %v643
        %v658 = vmul.f32 %v624, %v639
        %v659 = vmul.f32 %v624, %v643
        %v660 = vadd.f32 %v578, %v644
        %v661 = vadd.f32 %v579, %v645
        %v662 = vadd.f32 %v580, %v646
        %v663 = vadd.f32 %v581, %v647
        %v664 = vadd.f32 %v582, %v648
        %v665 = vadd.f32 %v583, %v649
        %v666 = vadd.f32 %v584, %v650
        %v667 = vadd.f32 %v585, %v651
        %v668 = vadd.f32 %v586, %v652
        %v669 = vadd.f32 %v587, %v653
        %v670 = vadd.f32 %v588, %v654
        %v671 = vadd.f32 %v589, %v655
        %v672 = vadd.f32 %v590, %v656
        %v673 = vadd.f32 %v591, %v657
        %v674 = vadd.f32 %v592, %v658
        %v675 = vadd.f32 %v593, %v659
        %v676 = vmax.f32 %v660, 0.0
        %v677 = vmax.f32 %v661, 0.0
        %v678 = vmax.f32 %v662, 0.0
        %v679 = vmax.f32 %v663, 0.0
        %v680 = vmax.f32 %v664, 0.0
        %v681 = vmax.f32 %v665, 0.0
        %v682 = vmax.f32 %v666, 0.0
        %v683 = vmax.f32 %v667, 0.0
        %v684 = vmax.f32 %v668, 0.0
        %v685 = vmax.f32 %v669, 0.0
        %v686 = vmax.f32 %v670, 0.0
        %v687 = vmax.f32 %v671, 0.0
        %v688 = vmax.f32 %v672, 0.0
        %v689 = vmax.f32 %v673, 0.0
        %v690 = vmax.f32 %v674, 0.0
        %v691 = vmax.f32 %v675, 0.0
        %v692 = vld [vmem:[%s3] sm:$0xf]
        %v693 = vld [vmem:[%s3 + $0x4] sm:$0xf]
        %v694 = vld [vmem:[%s3 + $0x8] sm:$0xf]
        %v695 = vld [vmem:[%s3 + $0xc] sm:$0xf]
        %v696 = vld [vmem:[%s3 + $0x10] sm:$0xf]
        %v697 = vld [vmem:[%s3 + $0x14] sm:$0xf]
        %v698 = vld [vmem:[%s3 + $0x18] sm:$0xf]
        %v699 = vld [vmem:[%s3 + $0x1c] sm:$0xf]
        %v700 = vpack.c.bf16 %v678, %v676
        %v701 = vpack.c.bf16 %v679, %v677
        %v702 = vpack.c.bf16 %v682, %v680
        %v703 = vpack.c.bf16 %v683, %v681
        %v704 = vpack.c.bf16 %v686, %v684
        %v705 = vpack.c.bf16 %v687, %v685
        %v706 = vpack.c.bf16 %v690, %v688
        %v707 = vpack.c.bf16 %v691, %v689
        %v708 = vld [vmem:[%s4] sm:$0xff]
        %v709 = vld [vmem:[%s4 + $0x8] sm:$0xff]
        %v710 = vld [vmem:[%s4 + $0x10] sm:$0xff]
        %v711 = vld [vmem:[%s4 + $0x18] sm:$0xff]
        %v712 = vld [vmem:[%s4 + $0x20] sm:$0xff]
        %v713 = vld [vmem:[%s4 + $0x28] sm:$0xff]
        %v714 = vld [vmem:[%s4 + $0x30] sm:$0xff]
        %v715 = vld [vmem:[%s4 + $0x38] sm:$0xff]
        %717 = vset.pattern.permute.xlu0 0
        %718 = vperm.xlu0 %717, %v708
        %v719 = vpop.permute.xlu0 %718
        %722 = vset.pattern.permute.xlu0 0
        %723 = vperm.xlu0 %722, %v709
        %v724 = vpop.permute.xlu0 %723
        %727 = vset.pattern.permute.xlu0 0
        %728 = vperm.xlu0 %727, %v710
        %v729 = vpop.permute.xlu0 %728
        %732 = vset.pattern.permute.xlu0 0
        %733 = vperm.xlu0 %732, %v711
        %v734 = vpop.permute.xlu0 %733
        %737 = vset.pattern.permute.xlu0 0
        %738 = vperm.xlu0 %737, %v712
        %v739 = vpop.permute.xlu0 %738
        %742 = vset.pattern.permute.xlu0 0
        %743 = vperm.xlu0 %742, %v713
        %v744 = vpop.permute.xlu0 %743
        %747 = vset.pattern.permute.xlu0 0
        %748 = vperm.xlu0 %747, %v714
        %v749 = vpop.permute.xlu0 %748
        %752 = vset.pattern.permute.xlu0 0
        %753 = vperm.xlu0 %752, %v715
        %v754 = vpop.permute.xlu0 %753
        %v764 = vunpack.c.l.b16 %v692
        %v765 = vunpack.c.l.b16 %v693
        %v766 = vunpack.c.l.b16 %v694
        %v767 = vunpack.c.l.b16 %v695
        %v768 = vunpack.c.l.b16 %v696
        %v769 = vunpack.c.l.b16 %v697
        %v770 = vunpack.c.l.b16 %v698
        %v771 = vunpack.c.l.b16 %v699
        %v772 = vpack.c.b16 %v765, %v764
        %v773 = vpack.c.b16 %v767, %v766
        %v774 = vpack.c.b16 %v769, %v768
        %v775 = vpack.c.b16 %v771, %v770
        %vm776 = vcmask 523264
        %v778 = vsel %vm776, %v772, 0
        %v781 = vsel %vm776, %v773, 0
        %v784 = vsel %vm776, %v774, 0
        %v787 = vsel %vm776, %v775, 0
        %789 = vmatprep.subr.bf16.mxu0 %v701
        %790 = vmatpush1.bf16.msra.mxu0 %v700
        %791 = vmatprep.subr.bf16.mxu0 %v703
        %792 = vmatpush1.bf16.msra.mxu0 %v702
        %793 = vmatprep.subr.bf16.mxu0 %v705
        %794 = vmatpush1.bf16.msra.mxu0 %v704
        %795 = vmatprep.subr.bf16.mxu0 %v707
        %796 = vmatpush1.bf16.msra.mxu0 %v706
        %797 = vmatprep.subr.bf16.mxu0 0
        %798 = vmatpush1.bf16.msra.mxu0 0
        %799 = vmatprep.subr.bf16.mxu0 0
        %800 = vmatpush1.bf16.msra.mxu0 0
        %801 = vmatprep.subr.bf16.mxu0 0
        %802 = vmatpush1.bf16.msra.mxu0 0
        %803 = vmatprep.subr.bf16.mxu0 0
        %804 = vmatpush1.bf16.msra.mxu0 0
        %805 = vmatprep.subr.bf16.mxu0 0
        %806 = vmatpush1.bf16.msra.mxu0 0
        %807 = vmatprep.subr.bf16.mxu0 0
        %808 = vmatpush1.bf16.msra.mxu0 0
        %809 = vmatprep.subr.bf16.mxu0 0
        %810 = vmatpush1.bf16.msra.mxu0 0
        %811 = vmatprep.subr.bf16.mxu0 0
        %812 = vmatpush1.bf16.msra.mxu0 0
        %813 = vmatprep.subr.bf16.mxu0 0
        %814 = vmatpush1.bf16.msra.mxu0 0
        %815 = vmatprep.subr.bf16.mxu0 0
        %816 = vmatpush1.bf16.msra.mxu0 0
        %817 = vmatprep.subr.bf16.mxu0 0
        %818 = vmatpush1.bf16.msra.mxu0 0
        %819 = vmatprep.subr.bf16.mxu0 0
        %820 = vmatpush1.bf16.msra.mxu0 0
        %821 = vmatprep.mubr.bf16.mxu0 0
        %822 = vmatmul.mubr.bf16.gmra.mrb[0].mxu0 %v778
        %v823 = vpop.f32.mrb[0].mxu0
        %v824 = vadd.f32 %v719, %v823
        %v825 = vpop.f32.mrb[0].mxu0
        %v826 = vadd.f32 %v719, %v825
        %v827 = vpop.f32.mrb[0].mxu0
        %v828 = vadd.f32 %v724, %v827
        %v829 = vpop.f32.mrb[0].mxu0
        %v830 = vadd.f32 %v724, %v829
        %831 = vmatprep.mubr.bf16.mxu0 0
        %832 = vmatmul.mubr.bf16.gmra.mrb[0].mxu0 %v781
        %v833 = vpop.f32.mrb[0].mxu0
        %v834 = vadd.f32 %v729, %v833
        %v835 = vpop.f32.mrb[0].mxu0
        %v836 = vadd.f32 %v729, %v835
        %v837 = vpop.f32.mrb[0].mxu0
        %v838 = vadd.f32 %v734, %v837
        %v839 = vpop.f32.mrb[0].mxu0
        %v840 = vadd.f32 %v734, %v839
        %841 = vmatprep.mubr.bf16.mxu0 0
        %842 = vmatmul.mubr.bf16.gmra.mrb[0].mxu0 %v784
        %v843 = vpop.f32.mrb[0].mxu0
        %v844 = vadd.f32 %v739, %v843
        %v845 = vpop.f32.mrb[0].mxu0
        %v846 = vadd.f32 %v739, %v845
        %v847 = vpop.f32.mrb[0].mxu0
        %v848 = vadd.f32 %v744, %v847
        %v849 = vpop.f32.mrb[0].mxu0
        %v850 = vadd.f32 %v744, %v849
        %851 = vmatprep.mubr.bf16.mxu0 0
        %852 = vmatmul.mubr.bf16.gmra.mrb[0].mxu0 %v787
        %v853 = vpop.f32.mrb[0].mxu0
        %v854 = vadd.f32 %v749, %v853
        %v855 = vpop.f32.mrb[0].mxu0
        %v856 = vadd.f32 %v749, %v855
        %v857 = vpop.f32.mrb[0].mxu0
        %v858 = vadd.f32 %v754, %v857
        %v859 = vpop.f32.mrb[0].mxu0
        %v860 = vadd.f32 %v754, %v859
        %861 = vdwg.mxu0
        %v862 = vmax.f32 %v824, 0.0
        %v863 = vmax.f32 %v826, 0.0
        %v864 = vmax.f32 %v828, 0.0
        %v865 = vmax.f32 %v830, 0.0
        %v866 = vmax.f32 %v834, 0.0
        %v867 = vmax.f32 %v836, 0.0
        %v868 = vmax.f32 %v838, 0.0
        %v869 = vmax.f32 %v840, 0.0
        %v870 = vmax.f32 %v844, 0.0
        %v871 = vmax.f32 %v846, 0.0
        %v872 = vmax.f32 %v848, 0.0
        %v873 = vmax.f32 %v850, 0.0
        %v874 = vmax.f32 %v854, 0.0
        %v875 = vmax.f32 %v856, 0.0
        %v876 = vmax.f32 %v858, 0.0
        %v877 = vmax.f32 %v860, 0.0
        %v878 = vld [vmem:[%s5] sm:$0xf]
        %v879 = vpack.c.bf16 %v864, %v862
        %v880 = vpack.c.bf16 %v865, %v863
        %v881 = vpack.c.bf16 %v868, %v866
        %v882 = vpack.c.bf16 %v869, %v867
        %v883 = vpack.c.bf16 %v872, %v870
        %v884 = vpack.c.bf16 %v873, %v871
        %v885 = vpack.c.bf16 %v876, %v874
        %v886 = vpack.c.bf16 %v877, %v875
        %v888 = vsel %vm776, %v878, 0
        %890 = vmatprep.subr.bf16.mxu0 %v880
        %891 = vmatpush1.bf16.msra.mxu0 %v879
        %892 = vmatprep.subr.bf16.mxu0 %v882
        %893 = vmatpush1.bf16.msra.mxu0 %v881
        %894 = vmatprep.subr.bf16.mxu0 %v884
        %895 = vmatpush1.bf16.msra.mxu0 %v883
        %896 = vmatprep.subr.bf16.mxu0 %v886
        %897 = vmatpush1.bf16.msra.mxu0 %v885
        %898 = vmatprep.subr.bf16.mxu0 0
        %899 = vmatpush1.bf16.msra.mxu0 0
        %900 = vmatprep.subr.bf16.mxu0 0
        %901 = vmatpush1.bf16.msra.mxu0 0
        %902 = vmatprep.subr.bf16.mxu0 0
        %903 = vmatpush1.bf16.msra.mxu0 0
        %904 = vmatprep.subr.bf16.mxu0 0
        %905 = vmatpush1.bf16.msra.mxu0 0
        %906 = vmatprep.subr.bf16.mxu0 0
        %907 = vmatpush1.bf16.msra.mxu0 0
        %908 = vmatprep.subr.bf16.mxu0 0
        %909 = vmatpush1.bf16.msra.mxu0 0
        %910 = vmatprep.subr.bf16.mxu0 0
        %911 = vmatpush1.bf16.msra.mxu0 0
        %912 = vmatprep.subr.bf16.mxu0 0
        %913 = vmatpush1.bf16.msra.mxu0 0
        %914 = vmatprep.subr.bf16.mxu0 0
        %915 = vmatpush1.bf16.msra.mxu0 0
        %916 = vmatprep.subr.bf16.mxu0 0
        %917 = vmatpush1.bf16.msra.mxu0 0
        %918 = vmatprep.subr.bf16.mxu0 0
        %919 = vmatpush1.bf16.msra.mxu0 0
        %920 = vmatprep.subr.bf16.mxu0 0
        %921 = vmatpush1.bf16.msra.mxu0 0
        %922 = vmatprep.mubr.bf16.mxu0 0
        %923 = vmatmul.mubr.bf16.gmra.mrb[0].mxu0 %v888
        %v924 = vpop.f32.mrb[0].mxu0
        %v925 = vadd.f32 0.0, %v924
        %v926 = vpop.f32.mrb[0].mxu0
        %v927 = vadd.f32 0.0, %v926
        %v928 = vpop.f32.mrb[0].mxu0
        %v929 = vpop.f32.mrb[0].mxu0
        %930 = vdwg.mxu0
        %931 = vst [vmem:[%s269] sm:$0xff] %v925
        %932 = vst [vmem:[%s269 + $0x8] sm:$0xff] %v927
        %s933 = sand.u32 %s175, 1
        %s934 = scalar_lea.sflag [#allocation3], %s933
        %s935 = sand.u32 %s175, 1
        %s936 = smul.addr %s935, 16
        %s937 = scalar_lea.vmem [#allocation2], %s936
        // Predicated region
        $region45: #{tpu_custom_call.1} parent=43 // pred_check
          %p938 = pneg %p185
        $region46: #{tpu_custom_call.1} parent=43 // pred_check_branch
          %940 = sbr.rel (%p938) target = $region48
        $region47: #{tpu_custom_call.1} parent=43 // pred_region
          %s941 = smul.u32 2, %s25
          %s943 = ssub.s32 256, 256
          %944 = vsyncadd %s934, %s943
          %s945 = smul.addr %s24, 2
          %s946 = sadd.s32 %s941, %s945
          %s947 = smul.addr %s946, 128
          %s948 = scalar_lea.hbm %s6, %s947
          %s950 = sshll.u32 %s937, 4
          %s951 = int_to_ptr.vmem [resolvable:$true] %s950
          %953 = dma.vmem_to_hbm [thread:$0]  %s951, 256, %s948, %s934
        $region48: #{tpu_custom_call.1} parent=43 // pred_fallthru
          _
      $region44: #{tpu_custom_call.1} parent=5 // pred_fallthru
        _
      %p954 = scmp.le.s32.totalorder 2, %s15
      // Predicated region
      $region49: #{tpu_custom_call.1} parent=5 // pred_check
        %p955 = pneg %p954
      $region50: #{tpu_custom_call.1} parent=5 // pred_check_branch
        %957 = sbr.rel (%p955) target = $region52
      $region51: #{tpu_custom_call.1} parent=5 // pred_region
        %s958 = ssub.s32 %s15, 2
        // Predicated region
        $region53: #{tpu_custom_call.1} parent=51 // pred_check
          %p959 = pneg %p191
        $region54: #{tpu_custom_call.1} parent=51 // pred_check_branch
          %961 = sbr.rel (%p959) target = $region56
        $region55: #{tpu_custom_call.1} parent=51 // pred_region
          %s962 = sand.u32 %s176, 1
          %s963 = scalar_lea.sflag [#allocation3], %s962
          %s964 = sand.u32 %s176, 1
          %s965 = smul.addr %s964, 16
          %s966 = scalar_lea.vmem [#allocation2], %s965
          %967 = dma.done %s963, 256
        $region56: #{tpu_custom_call.1} parent=51 // pred_fallthru
          _
      $region52: #{tpu_custom_call.1} parent=5 // pred_fallthru
        _
    $region6: #{tpu_custom_call.1} parent=1 // loop_footer
      %s19 = sadd.s32 1, %s15
    $region7: #{tpu_custom_call.1} parent=1 // loop_footer_branch
      %14 = sbr.rel target = $region3
    $region8: #{tpu_custom_call.1} parent=1 // loop_exit
      _
    %968 = vsyncpa [#allocation3], 1
    %s969 = scalar_lea.sflag [#allocation3], 1
    %970 = vsyncpa %s969, 1

</llo_original>
